<compile_context>
chip_gen: v5e
topology: v5e:2x2
jax: 0.10.0
libtpu: 0.0.40
codegen_flags: <defaults>
</compile_context>

<pallas_src>
import jax
import jax.numpy as jnp
from jax.experimental import pallas as pl
from jax.experimental.pallas import tpu as pltpu


def _patch_embed_kernel(patches_ref, w_pe_ref, b_pe_ref, xemb_ref):
    # (tile_m, K)bf16 x (K, E_pad)bf16 -> f32 MXU accumulation, f32 bias add.
    acc = jnp.dot(patches_ref[...], w_pe_ref[...],
                  preferred_element_type=jnp.float32)
    xemb_ref[...] = acc + b_pe_ref[...]


def _pick_tile_m(m):
    # Largest tile dividing M that still leaves >=2 grid steps (so both v7x
    # TensorCores get work).  All candidates are multiples of 16 (bf16 packs
    # 2 rows per sublane).  Ragged M falls back to a single full-M block
    # (block == full array dim is always a legal BlockSpec).
    for c in (512, 256, 128, 64, 32, 16):
        if m % c == 0 and m // c >= 2:
            return c
    return m


def posemb_selfatt_forward(x_nchw, params, *, patch_size, num_heads):
    """Forward of PosembSelfAtt: returns the patch embedding [B, N, E]
    (exactly what the PyTorch module returns; its attention branch is dead code)."""
    del num_heads  # only affects the discarded attention branch
    B, Cin, H, W = x_nchw.shape
    P = patch_size
    Gh, Gw = H // P, W // P
    N = Gh * Gw
    E = params["w_pe"].shape[0]            # conv weight [E, Cin, P, P]
    K = Cin * P * P
    M = B * N                              # batch folded into the GEMM M dim
    E_pad = max(128, pl.cdiv(E, 128) * 128)  # lane-dense output stores

    # --- patch extraction: NCHW -> [M, K] (channel-major within a patch,
    #     matching Conv2d weight flattening).  The bf16 cast fuses into the
    #     same XLA transpose, so the materialized intermediate is half-size.
    # TODO(synk): for large inputs, fold this extraction into the kernel
    # (grid over (B, Gh), block (Cin, P, W) on the raw input, in-VMEM
    # rearrange) to remove this HBM round trip entirely.
    patches = x_nchw.reshape(B, Cin, Gh, P, Gw, P)
    patches = patches.transpose(0, 2, 4, 1, 3, 5).reshape(M, K)
    patches = patches.astype(jnp.bfloat16)

    # Tiny weight/bias prep: reshape, transpose, pad E -> E_pad, cast.
    w_pe = params["w_pe"].reshape(E, K).T.astype(jnp.bfloat16)      # [K, E]
    b_pe = params["b_pe"].astype(jnp.float32)
    if E_pad != E:
        w_pe = jnp.pad(w_pe, ((0, 0), (0, E_pad - E)))
        b_pe = jnp.pad(b_pe, (0, E_pad - E))
    b_pe = b_pe.reshape(1, E_pad)
    # NOTE: K is left unpadded -- padding it would re-introduce an HBM copy of
    # the (large) activation; typical ViT K (=Cin*P*P) is already 128-aligned.

    tile_m = _pick_tile_m(M)
    grid_m = M // tile_m

    # VMEM budget: double-buffered activation/output tiles + resident weight.
    vmem_need = (2 * tile_m * K * 2          # patches tiles (bf16, 2 bufs)
                 + K * E_pad * 2             # weight (bf16, single buffer)
                 + E_pad * 4                 # bias (f32)
                 + 2 * tile_m * E_pad * 4)   # output tiles (f32, 2 bufs)
    vmem_limit = int(min(max(2 * vmem_need, 4 << 20), 48 << 20))

    cost = pl.CostEstimate(
        flops=2 * M * K * E_pad,
        transcendentals=0,
        bytes_accessed=M * K * 2 + K * E_pad * 2 + E_pad * 4 + M * E_pad * 4)

    def _build(resident_mode):
        resident_kw = ({} if resident_mode is None
                       else {"pipeline_mode": resident_mode})
        return pl.pallas_call(
            _patch_embed_kernel,
            out_shape=jax.ShapeDtypeStruct((M, E_pad), jnp.float32),
            grid=(grid_m,),
            in_specs=[
                pl.BlockSpec((tile_m, K), lambda i: (i, 0)),   # patches (tiled M)
                pl.BlockSpec((K, E_pad), lambda i: (0, 0),     # weight (resident)
                             **resident_kw),
                pl.BlockSpec((1, E_pad), lambda i: (0, 0),     # bias (resident)
                             **resident_kw),
            ],
            out_specs=pl.BlockSpec((tile_m, E_pad), lambda i: (i, 0)),
            compiler_params=pltpu.CompilerParams(
                # independent M tiles -> shardable across v7x's two TensorCores
                dimension_semantics=("parallel",),
                vmem_limit_bytes=vmem_limit),
            cost_estimate=cost,
        )

    try:
        # Constant index_map -> single-buffer the resident weight/bias
        # (halves their VMEM footprint; matters for large E/K on v7x).
        xemb = _build(pl.Buffered(1))(patches, w_pe, b_pe)
    except Exception:
        # Compatibility fallback (e.g. jax without BlockSpec.pipeline_mode):
        # identical math with default double buffering.
        xemb = _build(None)(patches, w_pe, b_pe)

    if E_pad != E:
        xemb = xemb[:, :E]
    return xemb.reshape(B, N, E)


def _init_params(key, emb_dim, num_heads, patch_size, grid_size, input_channels):
    # Mirrors the nn.Module's parameter set (most are unused by the forward's
    # returned value, exactly as in PyTorch).
    ks = jax.random.split(key, 10)
    P = patch_size
    K = input_channels * P * P
    s_conv = 1.0 / jnp.sqrt(K)
    s_lin = 1.0 / jnp.sqrt(emb_dim)
    return {
        "w_pe": jax.random.normal(ks[0], (emb_dim, input_channels, P, P), jnp.float32) * s_conv,
        "b_pe": jax.random.normal(ks[1], (emb_dim,), jnp.float32) * s_conv,
        "wq": jax.random.normal(ks[2], (emb_dim, emb_dim), jnp.float32) * s_lin,
        "bq": jax.random.normal(ks[3], (emb_dim,), jnp.float32) * s_lin,
        "wk": jax.random.normal(ks[4], (emb_dim, emb_dim), jnp.float32) * s_lin,
        "bk": jax.random.normal(ks[5], (emb_dim,), jnp.float32) * s_lin,
        "wv": jax.random.normal(ks[6], (emb_dim, emb_dim), jnp.float32) * s_lin,
        "bv": jax.random.normal(ks[7], (emb_dim,), jnp.float32) * s_lin,
        "wp": jax.random.normal(ks[8], (emb_dim, emb_dim), jnp.float32) * s_lin,
        "bp": jax.random.normal(ks[9], (emb_dim,), jnp.float32) * s_lin,
        # defined like the nn.Parameter, but unused in forward (as in PyTorch)
        "bias_table": jnp.zeros((2 * grid_size[0] - 1, 2 * grid_size[1] - 1), jnp.float32),
    }


def _reference_forward(x_nchw, params, *, patch_size):
    # Pure-JAX f32 reference of what the PyTorch forward RETURNS (patch embedding).
    B, Cin, H, W = x_nchw.shape
    P = patch_size
    Gh, Gw = H // P, W // P
    N = Gh * Gw
    E = params["w_pe"].shape[0]
    K = Cin * P * P
    patches = x_nchw.reshape(B, Cin, Gh, P, Gw, P)
    patches = patches.transpose(0, 2, 4, 1, 3, 5).reshape(B, N, K)
    w = params["w_pe"].reshape(E, K).T
    return patches @ w + params["b_pe"][None, None, :]


if __name__ == "__main__":
    # small shapes consistent with the module
    B, Cin, H, W = 2, 4, 16, 16
    patch_size = 4
    grid_size = (H // patch_size, W // patch_size)   # (4, 4) -> N = 16
    emb_dim = 32
    num_heads = 4

    key = jax.random.PRNGKey(0)
    kx, kp = jax.random.split(key)
    x = jax.random.normal(kx, (B, Cin, H, W), jnp.float32)
    params = _init_params(kp, emb_dim, num_heads, patch_size, grid_size, Cin)

    out = posemb_selfatt_forward(x, params, patch_size=patch_size,
                                 num_heads=num_heads)
    out = jax.block_until_ready(out)

    ref = _reference_forward(x, params, patch_size=patch_size)
    assert out.shape == (B, grid_size[0] * grid_size[1], emb_dim)
    # bf16 MXU inputs (f32 accumulation) -> relaxed tolerance vs the f32 reference.
    err = float(jnp.max(jnp.abs(out - ref)))
    assert jnp.allclose(out, ref, atol=3e-2, rtol=3e-2), err
    print("KERNEL_OK")
</pallas_src>

<mosaic_0001>
module attributes {stable_mosaic.version = 11 : i64} {
  func.func @_patch_embed_kernel(%arg0: i32, %arg1: memref<16x64xbf16, #tpu.memory_space<vmem>>, %arg2: memref<64x128xbf16, #tpu.memory_space<vmem>>, %arg3: memref<1x128xf32, #tpu.memory_space<vmem>>, %arg4: memref<16x128xf32, #tpu.memory_space<vmem>>) attributes {dimension_semantics = [#tpu.dimension_semantics<parallel>], iteration_bounds = array<i64: 2>, scalar_prefetch = 0 : i64, scratch_operands = 0 : i64, tpu.core_type = #tpu.core_type<tc>, window_params = [{transform_indices = @transform_0, window_bounds = array<i64: 16, 64>}, {pipeline_mode = #tpu.pipeline_mode<synchronous>, transform_indices = @transform_1, window_bounds = array<i64: 64, 128>}, {pipeline_mode = #tpu.pipeline_mode<synchronous>, transform_indices = @transform_2, window_bounds = array<i64: 1, 128>}, {transform_indices = @transform_3, window_bounds = array<i64: 16, 128>}]} {
    %c0 = arith.constant 0 : index
    %c0_0 = arith.constant 0 : index
    %0 = vector.load %arg1[%c0, %c0_0] : memref<16x64xbf16, #tpu.memory_space<vmem>>, vector<16x64xbf16>
    %c0_1 = arith.constant 0 : index
    %c0_2 = arith.constant 0 : index
    %1 = vector.load %arg2[%c0_1, %c0_2] : memref<64x128xbf16, #tpu.memory_space<vmem>>, vector<64x128xbf16>
    %cst = arith.constant dense<0.000000e+00> : vector<16x128xf32>
    %2 = tpu.matmul %0, %1, %cst {dimension_numbers = #tpu.dot_dimension_numbers<[1], [0], [0], [1], [0, 0, 1, 1], [], []>} : vector<16x64xbf16>, vector<64x128xbf16>, vector<16x128xf32> -> vector<16x128xf32>
    %c0_3 = arith.constant 0 : index
    %c0_4 = arith.constant 0 : index
    %3 = vector.load %arg3[%c0_3, %c0_4] : memref<1x128xf32, #tpu.memory_space<vmem>>, vector<1x128xf32>
    %4 = vector.broadcast %3 : vector<1x128xf32> to vector<16x128xf32>
    %5 = arith.addf %2, %4 : vector<16x128xf32>
    %c0_5 = arith.constant 0 : index
    %c0_6 = arith.constant 0 : index
    %6 = vector.load %arg4[%c0_5, %c0_6] : memref<16x128xf32, #tpu.memory_space<vmem>>, vector<16x128xf32>
    tpu.vector_store %arg4[%c0_5, %c0_6], %5 {strides = array<i32>} : memref<16x128xf32, #tpu.memory_space<vmem>>, vector<16x128xf32>,
    return
  }
  func.func @transform_0(%arg0: i32) -> (i32, i32) {
    %c0_i32 = arith.constant 0 : i32
    %c0_i32_0 = arith.constant 0 : i32
    return %arg0, %c0_i32 : i32, i32
  }
  func.func @transform_1(%arg0: i32) -> (i32, i32) {
    %c0_i32 = arith.constant 0 : i32
    %c0_i32_0 = arith.constant 0 : i32
    %c0_i32_1 = arith.constant 0 : i32
    return %c0_i32, %c0_i32_0 : i32, i32
  }
  func.func @transform_2(%arg0: i32) -> (i32, i32) {
    %c0_i32 = arith.constant 0 : i32
    %c0_i32_0 = arith.constant 0 : i32
    %c0_i32_1 = arith.constant 0 : i32
    return %c0_i32, %c0_i32_0 : i32, i32
  }
  func.func @transform_3(%arg0: i32) -> (i32, i32) {
    %c0_i32 = arith.constant 0 : i32
    %c0_i32_0 = arith.constant 0 : i32
    return %arg0, %c0_i32 : i32, i32
  }
}

module attributes {stable_mosaic.version = 11 : i64} {
  func.func @_patch_embed_kernel(%arg0: i32, %arg1: memref<16x64xbf16, #tpu.memory_space<vmem>>, %arg2: memref<64x128xbf16, #tpu.memory_space<vmem>>, %arg3: memref<1x128xf32, #tpu.memory_space<vmem>>, %arg4: memref<16x128xf32, #tpu.memory_space<vmem>>) attributes {dimension_semantics = [#tpu.dimension_semantics<parallel>], iteration_bounds = array<i64: 2>, scalar_prefetch = 0 : i64, scratch_operands = 0 : i64, tpu.core_type = #tpu.core_type<tc>, window_params = [{transform_indices = @transform_0, window_bounds = array<i64: 16, 64>}, {pipeline_mode = #tpu.pipeline_mode<synchronous>, transform_indices = @transform_1, window_bounds = array<i64: 64, 128>}, {pipeline_mode = #tpu.pipeline_mode<synchronous>, transform_indices = @transform_2, window_bounds = array<i64: 1, 128>}, {transform_indices = @transform_3, window_bounds = array<i64: 16, 128>}]} {
    %c0 = arith.constant 0 : index
    %c0_0 = arith.constant 0 : index
    %0 = vector.load %arg1[%c0, %c0_0] : memref<16x64xbf16, #tpu.memory_space<vmem>>, vector<16x64xbf16>
    %c0_1 = arith.constant 0 : index
    %c0_2 = arith.constant 0 : index
    %1 = vector.load %arg2[%c0_1, %c0_2] : memref<64x128xbf16, #tpu.memory_space<vmem>>, vector<64x128xbf16>
    %cst = arith.constant dense<0.000000e+00> : vector<16x128xf32>
    %2 = tpu.matmul %0, %1, %cst {dimension_numbers = #tpu.dot_dimension_numbers<[1], [0], [0], [1], [0, 0, 1, 1], [], []>} : vector<16x64xbf16>, vector<64x128xbf16>, vector<16x128xf32> -> vector<16x128xf32>
    %c0_3 = arith.constant 0 : index
    %c0_4 = arith.constant 0 : index
    %3 = vector.load %arg3[%c0_3, %c0_4] : memref<1x128xf32, #tpu.memory_space<vmem>>, vector<1x128xf32>
    %4 = vector.broadcast %3 : vector<1x128xf32> to vector<16x128xf32>
    %5 = arith.addf %2, %4 : vector<16x128xf32>
    %c0_5 = arith.constant 0 : index
    %c0_6 = arith.constant 0 : index
    %6 = vector.load %arg4[%c0_5, %c0_6] : memref<16x128xf32, #tpu.memory_space<vmem>>, vector<16x128xf32>
    tpu.vector_store %arg4[%c0_5, %c0_6], %5 {strides = array<i32>} : memref<16x128xf32, #tpu.memory_space<vmem>>, vector<16x128xf32>,
    return
  }
  func.func @transform_0(%arg0: i32) -> (i32, i32) {
    %c0_i32 = arith.constant 0 : i32
    %c0_i32_0 = arith.constant 0 : i32
    return %arg0, %c0_i32 : i32, i32
  }
  func.func @transform_1(%arg0: i32) -> (i32, i32) {
    %c0_i32 = arith.constant 0 : i32
    %c0_i32_0 = arith.constant 0 : i32
    %c0_i32_1 = arith.constant 0 : i32
    return %c0_i32, %c0_i32_0 : i32, i32
  }
  func.func @transform_2(%arg0: i32) -> (i32, i32) {
    %c0_i32 = arith.constant 0 : i32
    %c0_i32_0 = arith.constant 0 : i32
    %c0_i32_1 = arith.constant 0 : i32
    return %c0_i32, %c0_i32_0 : i32, i32
  }
  func.func @transform_3(%arg0: i32) -> (i32, i32) {
    %c0_i32 = arith.constant 0 : i32
    %c0_i32_0 = arith.constant 0 : i32
    return %arg0, %c0_i32 : i32, i32
  }
}

</mosaic_0001>

<llo_original>
// kernel: tpu_custom_call.1
$region0: #{tpu_custom_call.1}
  #allocation0 [shape = 'u32[]', space=smem, size = 0x4, offset = 0x4, fixed_abs, tag = 'smem constant byte address 0x4 - core index']
  #allocation1 [shape = 'u32[72,128]{1,0:T(1,128)}', space=vmem, size = 0x9000, scoped, tag = 'internal scratch']
  %s0 = inlined_call_operand.hbm [shape: bf16[32,64], index: 0, kind: input, shape index: {}]
  %s1 = inlined_call_operand.hbm [shape: bf16[64,128], index: 1, kind: input, shape index: {}]
  %s2 = inlined_call_operand.vmem [shape: f32[1,128], index: 2, kind: input, shape index: {}]
  %s3 = inlined_call_operand.hbm [shape: f32[32,128], index: 3, kind: output, shape index: {}]
  %s4 = sld [smem:[#allocation0]]
  $region53: #{tpu_custom_call.1} parent=0
    _
  %s6 = ssub.s32 1, %s4
  %s7 = scalar_select 0, %s6, %s4
  $region1: #{tpu_custom_call.1} parent=0
    #allocation2 [shape = 'u8[8192]{0}', space=vmem, size = 0x2000, scoped, tag = 'input window, operand 0']
    #allocation3 [shape = 's32[2]{0}', space=sflag, size = 0x8, scoped, tag = 'scoped memory for tpu_custom_call.1']
    #allocation4 [shape = 's32[2]{0}', space=sflag, size = 0x8, scoped, tag = 'scoped memory for tpu_custom_call.1']
    #allocation5 [shape = 'u8[16384]{0}', space=vmem, size = 0x4000, scoped, tag = 'input window, operand 1, single buffered']
    #allocation6 [shape = 's32[1]{0}', space=sflag, size = 0x4, scoped, tag = 'scoped memory for tpu_custom_call.1']
    #allocation7 [shape = 'u8[16384]{0}', space=vmem, size = 0x4000, scoped, tag = 'output window, operand 0']
    %8 = vsyncpa [#allocation3], 0
    %s9 = scalar_lea.sflag [#allocation3], 1
    %10 = vsyncpa %s9, 0
    %11 = vsyncpa [#allocation6], 0
    %12 = vsyncpa [#allocation4], 0
    %s13 = scalar_lea.sflag [#allocation4], 1
    %14 = vsyncpa %s13, 0
    loop: start=0, step=1, limit=4
    $region2: #{tpu_custom_call.1} parent=1 // loop_pre_header
      _
    $region3: #{tpu_custom_call.1} parent=1 // loop_header
      %s16 = sphi 0, %s20
      %p17 = scmp.ge.s32.totalorder %s16, 4
      %s26 = sphi 0, %s28
      %s29 = sphi 0, %s26
      %s30 = sphi 0, %s29
      %s46 = sphi 0, %s30
      %s50 = sphi 0, %s50
      %s52 = sphi 0, %s50
      %s53 = sphi 0, %s52
      %s67 = sphi 0, %s53
      %s71 = sphi 0, %s71
      %s73 = sphi 0, %s71
      %s74 = sphi 0, %s73
      %s88 = sphi 0, %s74
      %s94 = sphi 0, %s96
      %s97 = sphi 0, %s94
      %s98 = sphi 0, %s97
      %s114 = sphi 0, %s98
    $region4: #{tpu_custom_call.1} parent=1 // loop_header_branch
      %19 = sbr.rel (%p17) target = $region8
    $region5: #{tpu_custom_call.1} parent=1 // loop_body
      %s21 = ssub.s32 %s16, 1
      %s22 = ssub.s32 %s16, 2
      %s23 = sadd.s32 %s16, 1
      %s24 = ssub.s32 %s16, %s23
      %p25 = scmp.eq.s32.totalorder %s24, 0
      %s27 = sadd.s32 %s26, 1
      %s28 = scalar_select %p25, %s26, %s27
      %p31 = pneg %p25
      %p32 = scmp.eq.s32.totalorder %s16, 1
      %p33 = por %p31, %p32
      %p34 = scmp.ne.s32.totalorder %s26, %s29
      %p35 = scmp.eq.s32.totalorder %s16, 0
      %p36 = por %p34, %p35
      %p37 = scmp.ne.s32.totalorder %s26, %s29
      %p38 = scmp.eq.s32.totalorder %s21, 1
      %p39 = por %p37, %p38
      %p40 = scmp.ne.s32.totalorder %s29, %s30
      %p41 = scmp.eq.s32.totalorder %s21, 0
      %p42 = por %p40, %p41
      %p43 = scmp.ne.s32.totalorder %s29, %s30
      %p44 = scmp.eq.s32.totalorder %s22, 1
      %p45 = por %p43, %p44
      %p47 = scmp.ne.s32.totalorder %s30, %s46
      %p48 = scmp.eq.s32.totalorder %s22, 0
      %p49 = por %p47, %p48
      %s51 = sadd.s32 %s50, 1
      %p54 = scmp.eq.s32.totalorder %s16, 1
      %p55 = scmp.ne.s32.totalorder %s50, %s52
      %p56 = scmp.eq.s32.totalorder %s16, 0
      %p57 = por %p55, %p56
      %p58 = scmp.ne.s32.totalorder %s50, %s52
      %p59 = scmp.eq.s32.totalorder %s21, 1
      %p60 = por %p58, %p59
      %p61 = scmp.ne.s32.totalorder %s52, %s53
      %p62 = scmp.eq.s32.totalorder %s21, 0
      %p63 = por %p61, %p62
      %p64 = scmp.ne.s32.totalorder %s52, %s53
      %p65 = scmp.eq.s32.totalorder %s22, 1
      %p66 = por %p64, %p65
      %p68 = scmp.ne.s32.totalorder %s53, %s67
      %p69 = scmp.eq.s32.totalorder %s22, 0
      %p70 = por %p68, %p69
      %s72 = sadd.s32 %s71, 1
      %p75 = scmp.eq.s32.totalorder %s16, 1
      %p76 = scmp.ne.s32.totalorder %s71, %s73
      %p77 = scmp.eq.s32.totalorder %s16, 0
      %p78 = por %p76, %p77
      %p79 = scmp.ne.s32.totalorder %s71, %s73
      %p80 = scmp.eq.s32.totalorder %s21, 1
      %p81 = por %p79, %p80
      %p82 = scmp.ne.s32.totalorder %s73, %s74
      %p83 = scmp.eq.s32.totalorder %s21, 0
      %p84 = por %p82, %p83
      %p85 = scmp.ne.s32.totalorder %s73, %s74
      %p86 = scmp.eq.s32.totalorder %s22, 1
      %p87 = por %p85, %p86
      %p89 = scmp.ne.s32.totalorder %s74, %s88
      %p90 = scmp.eq.s32.totalorder %s22, 0
      %p91 = por %p89, %p90
      %s92 = ssub.s32 %s16, %s23
      %p93 = scmp.eq.s32.totalorder %s92, 0
      %s95 = sadd.s32 %s94, 1
      %s96 = scalar_select %p93, %s94, %s95
      %p99 = pneg %p93
      %p100 = scmp.eq.s32.totalorder %s16, 1
      %p101 = por %p99, %p100
      %p102 = scmp.ne.s32.totalorder %s94, %s97
      %p103 = scmp.eq.s32.totalorder %s16, 0
      %p104 = por %p102, %p103
      %p105 = scmp.ne.s32.totalorder %s94, %s97
      %p106 = scmp.eq.s32.totalorder %s21, 1
      %p107 = por %p105, %p106
      %p108 = scmp.ne.s32.totalorder %s97, %s98
      %p109 = scmp.eq.s32.totalorder %s21, 0
      %p110 = por %p108, %p109
      %p111 = scmp.ne.s32.totalorder %s97, %s98
      %p112 = scmp.eq.s32.totalorder %s22, 1
      %p113 = por %p111, %p112
      %p115 = scmp.ne.s32.totalorder %s98, %s114
      %p116 = scmp.eq.s32.totalorder %s22, 0
      %p117 = por %p115, %p116
      %p118 = scmp.le.s32.totalorder 1, %s16
      %p119 = scmp.lt.s32.totalorder %s16, 3
      %p120 = pnand %p118, %p119
      %p121 = pneg %p120
      // Predicated region
      $region9: #{tpu_custom_call.1} parent=5 // pred_check
        _
      $region10: #{tpu_custom_call.1} parent=5 // pred_check_branch
        %123 = sbr.rel (%p120) target = $region12
      $region11: #{tpu_custom_call.1} parent=5 // pred_region
        %s124 = ssub.s32 %s16, 1
        // Predicated region
        $region13: #{tpu_custom_call.1} parent=11 // pred_check
          %p125 = pneg %p63
        $region14: #{tpu_custom_call.1} parent=11 // pred_check_branch
          %127 = sbr.rel (%p125) target = $region16
        $region15: #{tpu_custom_call.1} parent=11 // pred_region
          %129 = vsyncadd [#allocation6], 0
          %s130 = sshll.u32 %s1, 4
          %s131 = int_to_ptr.hbm [resolvable:$true] %s130
          %s132 = sshll.u32 [#allocation5], 4
          %s133 = int_to_ptr.vmem [resolvable:$true] %s132
          %138 = dma.hbm_to_vmem [thread:$0]  %s131, 512, %s133, [#allocation6], 64, 64, 4
        $region16: #{tpu_custom_call.1} parent=11 // pred_fallthru
          _
        // Predicated region
        $region17: #{tpu_custom_call.1} parent=11 // pred_check
          %p139 = pneg %p84
        $region18: #{tpu_custom_call.1} parent=11 // pred_check_branch
          %141 = sbr.rel (%p139) target = $region20
        $region19: #{tpu_custom_call.1} parent=11 // pred_region
          _
        $region20: #{tpu_custom_call.1} parent=11 // pred_fallthru
          _
      $region12: #{tpu_custom_call.1} parent=5 // pred_fallthru
        _
      %p142 = scmp.lt.s32.totalorder %s16, 2
      // Predicated region
      $region21: #{tpu_custom_call.1} parent=5 // pred_check
        %p143 = pneg %p142
      $region22: #{tpu_custom_call.1} parent=5 // pred_check_branch
        %145 = sbr.rel (%p143) target = $region24
      $region23: #{tpu_custom_call.1} parent=5 // pred_region
        // Predicated region
        $region25: #{tpu_custom_call.1} parent=23 // pred_check
          %p146 = pneg %p36
        $region26: #{tpu_custom_call.1} parent=23 // pred_check_branch
          %148 = sbr.rel (%p146) target = $region28
        $region27: #{tpu_custom_call.1} parent=23 // pred_region
          %s149 = sand.u32 %s26, 1
          %s150 = scalar_lea.sflag [#allocation3], %s149
          %s151 = sand.u32 %s26, 1
          %s152 = smul.addr %s151, 8
          %s153 = scalar_lea.vmem [#allocation2], %s152
          %s154 = smul.u32 2, %s16
          %156 = vsyncadd %s150, 0
          %s157 = smul.addr %s154, 4
          %s158 = scalar_lea.hbm %s0, %s157
          %s159 = sshll.u32 %s158, 4
          %s160 = int_to_ptr.hbm [resolvable:$true] %s159
          %s161 = sshll.u32 %s153, 4
          %s162 = int_to_ptr.vmem [resolvable:$true] %s161
          %167 = dma.hbm_to_vmem [thread:$0]  %s160, 128, %s162, %s150, 64, 64, 4
        $region28: #{tpu_custom_call.1} parent=23 // pred_fallthru
          _
      $region24: #{tpu_custom_call.1} parent=5 // pred_fallthru
        _
      %p168 = scmp.le.s32.totalorder 1, %s16
      %p169 = scmp.lt.s32.totalorder %s16, 3
      %p170 = pnand %p168, %p169
      %p171 = pneg %p170
      // Predicated region
      $region29: #{tpu_custom_call.1} parent=5 // pred_check
        _
      $region30: #{tpu_custom_call.1} parent=5 // pred_check_branch
        %173 = sbr.rel (%p170) target = $region32
      $region31: #{tpu_custom_call.1} parent=5 // pred_region
        %s174 = ssub.s32 %s16, 1
        %s175 = sand.u32 %s29, 1
        %s176 = scalar_lea.sflag [#allocation3], %s175
        %s177 = sand.u32 %s29, 1
        %s178 = smul.addr %s177, 8
        %s179 = scalar_lea.vmem [#allocation2], %s178
        // Predicated region
        $region33: #{tpu_custom_call.1} parent=31 // pred_check
          %p180 = pneg %p42
        $region34: #{tpu_custom_call.1} parent=31 // pred_check_branch
          %182 = sbr.rel (%p180) target = $region36
        $region35: #{tpu_custom_call.1} parent=31 // pred_region
          %184 = dma.done %s176, 128
        $region36: #{tpu_custom_call.1} parent=31 // pred_fallthru
          _
        // Predicated region
        $region37: #{tpu_custom_call.1} parent=31 // pred_check
          %p185 = pneg %p63
        $region38: #{tpu_custom_call.1} parent=31 // pred_check_branch
          %187 = sbr.rel (%p185) target = $region40
        $region39: #{tpu_custom_call.1} parent=31 // pred_region
          %189 = dma.done [#allocation6], 512
        $region40: #{tpu_custom_call.1} parent=31 // pred_fallthru
          _
        %s190 = sand.u32 %s29, 1
        %s191 = scalar_lea.sflag [#allocation3], %s190
        %s192 = sand.u32 %s29, 1
        %s193 = smul.addr %s192, 8
        %s194 = scalar_lea.vmem [#allocation2], %s193
        %p195 = pneg %p42
        %p196 = pneg %p39
        %p197 = pneg %p63
        %p198 = pneg %p60
        %p199 = pneg %p84
        %p200 = pneg %p81
        %p201 = pneg %p110
        %p202 = pneg %p107
        %s203 = sand.u32 %s97, 1
        %s204 = scalar_lea.sflag [#allocation4], %s203
        %s205 = sand.u32 %s97, 1
        %s206 = smul.addr %s205, 16
        %s207 = scalar_lea.vmem [#allocation7], %s206
        %s208 = smul.u32 2, %s21
        %s209 = smul.u32 2, %s21
        %v211 = vld [vmem:[%s179] sm:$0xf]
        %v212 = vld [vmem:[%s179 + $0x4] sm:$0xf]
        %v213 = vld [vmem:[#allocation5] sm:$0xf]
        %v214 = vld [vmem:[#allocation5 + $0x4] sm:$0xf]
        %v215 = vld [vmem:[#allocation5 + $0x8] sm:$0xf]
        %v216 = vld [vmem:[#allocation5 + $0xc] sm:$0xf]
        %v217 = vld [vmem:[#allocation5 + $0x10] sm:$0xf]
        %v218 = vld [vmem:[#allocation5 + $0x14] sm:$0xf]
        %v219 = vld [vmem:[#allocation5 + $0x18] sm:$0xf]
        %v220 = vld [vmem:[#allocation5 + $0x1c] sm:$0xf]
        %v221 = vld [vmem:[%s2] sm:$0x1]
        %v223 = vperm.slane %v221, 0
        %v227 = vunpack.c.l.b16 %v211
        %v228 = vunpack.c.l.b16 %v212
        %v229 = vpack.c.b16 %v228, %v227
        %v238 = vunpack.c.l.b16 %v213
        %v239 = vunpack.c.l.b16 %v214
        %v240 = vunpack.c.l.b16 %v215
        %v241 = vunpack.c.l.b16 %v216
        %v242 = vunpack.c.l.b16 %v217
        %v243 = vunpack.c.l.b16 %v218
        %v244 = vunpack.c.l.b16 %v219
        %v245 = vunpack.c.l.b16 %v220
        %v246 = vpack.c.b16 %v239, %v238
        %v247 = vpack.c.b16 %v241, %v240
        %v248 = vpack.c.b16 %v243, %v242
        %v249 = vpack.c.b16 %v245, %v244
        %vm254 = vcmask 523264
        %v256 = vsel %vm254, %v229, 0
        %258 = vmatpush.bf16.msra.mxu0 0
        %259 = vmatpush.bf16.msra.mxu0 0
        %260 = vmatpush.bf16.msra.mxu0 0
        %261 = vmatpush.bf16.msra.mxu0 0
        %262 = vmatpush.bf16.msra.mxu0 %v249
        %263 = vmatpush.bf16.msra.mxu0 %v248
        %264 = vmatpush.bf16.msra.mxu0 %v247
        %265 = vmatpush.bf16.msra.mxu0 %v246
        %266 = vmatmul.bf16.gmra.mxu0 %v256
        %v267 = vpop.f32.mrf.mxu0
        %v268 = vadd.f32 %v223, %v267
        %v269 = vpop.f32.mrf.mxu0
        %v270 = vadd.f32 %v223, %v269
        %271 = vdwg.mxu0
        %272 = vst [vmem:[%s207] sm:$0xff] %v268
        %273 = vst [vmem:[%s207 + $0x8] sm:$0xff] %v270
        %s274 = sand.u32 %s97, 1
        %s275 = scalar_lea.sflag [#allocation4], %s274
        %s276 = sand.u32 %s97, 1
        %s277 = smul.addr %s276, 16
        %s278 = scalar_lea.vmem [#allocation7], %s277
        // Predicated region
        $region41: #{tpu_custom_call.1} parent=31 // pred_check
          %p279 = pneg %p107
        $region42: #{tpu_custom_call.1} parent=31 // pred_check_branch
          %281 = sbr.rel (%p279) target = $region44
        $region43: #{tpu_custom_call.1} parent=31 // pred_region
          %s282 = smul.u32 2, %s21
          %284 = vsyncadd %s275, 0
          %s285 = smul.addr %s282, 8
          %s286 = scalar_lea.hbm %s3, %s285
          %s287 = sshll.u32 %s278, 4
          %s288 = int_to_ptr.vmem [resolvable:$true] %s287
          %s289 = sshll.u32 %s286, 4
          %s290 = int_to_ptr.hbm [resolvable:$true] %s289
          %295 = dma.vmem_to_hbm [thread:$0]  %s288, 256, %s290, %s275, 128, 128, 8
        $region44: #{tpu_custom_call.1} parent=31 // pred_fallthru
          _
      $region32: #{tpu_custom_call.1} parent=5 // pred_fallthru
        _
      %p296 = scmp.le.s32.totalorder 2, %s16
      // Predicated region
      $region45: #{tpu_custom_call.1} parent=5 // pred_check
        %p297 = pneg %p296
      $region46: #{tpu_custom_call.1} parent=5 // pred_check_branch
        %299 = sbr.rel (%p297) target = $region48
      $region47: #{tpu_custom_call.1} parent=5 // pred_region
        %s300 = ssub.s32 %s16, 2
        // Predicated region
        $region49: #{tpu_custom_call.1} parent=47 // pred_check
          %p301 = pneg %p113
        $region50: #{tpu_custom_call.1} parent=47 // pred_check_branch
          %303 = sbr.rel (%p301) target = $region52
        $region51: #{tpu_custom_call.1} parent=47 // pred_region
          %s304 = sand.u32 %s98, 1
          %s305 = scalar_lea.sflag [#allocation4], %s304
          %s306 = sand.u32 %s98, 1
          %s307 = smul.addr %s306, 16
          %s308 = scalar_lea.vmem [#allocation7], %s307
          %310 = dma.done %s305, 256
        $region52: #{tpu_custom_call.1} parent=47 // pred_fallthru
          _
      $region48: #{tpu_custom_call.1} parent=5 // pred_fallthru
        _
    $region6: #{tpu_custom_call.1} parent=1 // loop_footer
      %s20 = sadd.s32 1, %s16
    $region7: #{tpu_custom_call.1} parent=1 // loop_footer_branch
      %15 = sbr.rel target = $region3
    $region8: #{tpu_custom_call.1} parent=1 // loop_exit
      _
    %311 = vsyncpa [#allocation3], 1
    %s312 = scalar_lea.sflag [#allocation3], 1
    %313 = vsyncpa %s312, 1
    %314 = vsyncpa [#allocation6], 1
    %315 = vsyncpa [#allocation4], 1
    %s316 = scalar_lea.sflag [#allocation4], 1
    %317 = vsyncpa %s316, 1

// kernel: tpu_custom_call.1
$region0: #{tpu_custom_call.1}
  #allocation0 [shape = 'u32[]', space=smem, size = 0x4, offset = 0x4, fixed_abs, tag = 'smem constant byte address 0x4 - core index']
  #allocation1 [shape = 'u32[72,128]{1,0:T(1,128)}', space=vmem, size = 0x9000, scoped, tag = 'internal scratch']
  %s0 = inlined_call_operand.hbm [shape: bf16[32,64], index: 0, kind: input, shape index: {}]
  %s1 = inlined_call_operand.hbm [shape: bf16[64,128], index: 1, kind: input, shape index: {}]
  %s2 = inlined_call_operand.vmem [shape: f32[1,128], index: 2, kind: input, shape index: {}]
  %s3 = inlined_call_operand.hbm [shape: f32[32,128], index: 3, kind: output, shape index: {}]
  %s4 = sld [smem:[#allocation0]]
  $region53: #{tpu_custom_call.1} parent=0
    _
  %s6 = ssub.s32 1, %s4
  %s7 = scalar_select 0, %s6, %s4
  $region1: #{tpu_custom_call.1} parent=0
    #allocation2 [shape = 'u8[8192]{0}', space=vmem, size = 0x2000, scoped, tag = 'input window, operand 0']
    #allocation3 [shape = 's32[2]{0}', space=sflag, size = 0x8, scoped, tag = 'scoped memory for tpu_custom_call.1']
    #allocation4 [shape = 's32[2]{0}', space=sflag, size = 0x8, scoped, tag = 'scoped memory for tpu_custom_call.1']
    #allocation5 [shape = 'u8[16384]{0}', space=vmem, size = 0x4000, scoped, tag = 'input window, operand 1, single buffered']
    #allocation6 [shape = 's32[1]{0}', space=sflag, size = 0x4, scoped, tag = 'scoped memory for tpu_custom_call.1']
    #allocation7 [shape = 'u8[16384]{0}', space=vmem, size = 0x4000, scoped, tag = 'output window, operand 0']
    %8 = vsyncpa [#allocation3], 0
    %s9 = scalar_lea.sflag [#allocation3], 1
    %10 = vsyncpa %s9, 0
    %11 = vsyncpa [#allocation6], 0
    %12 = vsyncpa [#allocation4], 0
    %s13 = scalar_lea.sflag [#allocation4], 1
    %14 = vsyncpa %s13, 0
    loop: start=0, step=1, limit=4
    $region2: #{tpu_custom_call.1} parent=1 // loop_pre_header
      _
    $region3: #{tpu_custom_call.1} parent=1 // loop_header
      %s16 = sphi 0, %s20
      %p17 = scmp.ge.s32.totalorder %s16, 4
      %s26 = sphi 0, %s28
      %s29 = sphi 0, %s26
      %s30 = sphi 0, %s29
      %s46 = sphi 0, %s30
      %s50 = sphi 0, %s50
      %s52 = sphi 0, %s50
      %s53 = sphi 0, %s52
      %s67 = sphi 0, %s53
      %s71 = sphi 0, %s71
      %s73 = sphi 0, %s71
      %s74 = sphi 0, %s73
      %s88 = sphi 0, %s74
      %s94 = sphi 0, %s96
      %s97 = sphi 0, %s94
      %s98 = sphi 0, %s97
      %s114 = sphi 0, %s98
    $region4: #{tpu_custom_call.1} parent=1 // loop_header_branch
      %19 = sbr.rel (%p17) target = $region8
    $region5: #{tpu_custom_call.1} parent=1 // loop_body
      %s21 = ssub.s32 %s16, 1
      %s22 = ssub.s32 %s16, 2
      %s23 = sadd.s32 %s16, 1
      %s24 = ssub.s32 %s16, %s23
      %p25 = scmp.eq.s32.totalorder %s24, 0
      %s27 = sadd.s32 %s26, 1
      %s28 = scalar_select %p25, %s26, %s27
      %p31 = pneg %p25
      %p32 = scmp.eq.s32.totalorder %s16, 1
      %p33 = por %p31, %p32
      %p34 = scmp.ne.s32.totalorder %s26, %s29
      %p35 = scmp.eq.s32.totalorder %s16, 0
      %p36 = por %p34, %p35
      %p37 = scmp.ne.s32.totalorder %s26, %s29
      %p38 = scmp.eq.s32.totalorder %s21, 1
      %p39 = por %p37, %p38
      %p40 = scmp.ne.s32.totalorder %s29, %s30
      %p41 = scmp.eq.s32.totalorder %s21, 0
      %p42 = por %p40, %p41
      %p43 = scmp.ne.s32.totalorder %s29, %s30
      %p44 = scmp.eq.s32.totalorder %s22, 1
      %p45 = por %p43, %p44
      %p47 = scmp.ne.s32.totalorder %s30, %s46
      %p48 = scmp.eq.s32.totalorder %s22, 0
      %p49 = por %p47, %p48
      %s51 = sadd.s32 %s50, 1
      %p54 = scmp.eq.s32.totalorder %s16, 1
      %p55 = scmp.ne.s32.totalorder %s50, %s52
      %p56 = scmp.eq.s32.totalorder %s16, 0
      %p57 = por %p55, %p56
      %p58 = scmp.ne.s32.totalorder %s50, %s52
      %p59 = scmp.eq.s32.totalorder %s21, 1
      %p60 = por %p58, %p59
      %p61 = scmp.ne.s32.totalorder %s52, %s53
      %p62 = scmp.eq.s32.totalorder %s21, 0
      %p63 = por %p61, %p62
      %p64 = scmp.ne.s32.totalorder %s52, %s53
      %p65 = scmp.eq.s32.totalorder %s22, 1
      %p66 = por %p64, %p65
      %p68 = scmp.ne.s32.totalorder %s53, %s67
      %p69 = scmp.eq.s32.totalorder %s22, 0
      %p70 = por %p68, %p69
      %s72 = sadd.s32 %s71, 1
      %p75 = scmp.eq.s32.totalorder %s16, 1
      %p76 = scmp.ne.s32.totalorder %s71, %s73
      %p77 = scmp.eq.s32.totalorder %s16, 0
      %p78 = por %p76, %p77
      %p79 = scmp.ne.s32.totalorder %s71, %s73
      %p80 = scmp.eq.s32.totalorder %s21, 1
      %p81 = por %p79, %p80
      %p82 = scmp.ne.s32.totalorder %s73, %s74
      %p83 = scmp.eq.s32.totalorder %s21, 0
      %p84 = por %p82, %p83
      %p85 = scmp.ne.s32.totalorder %s73, %s74
      %p86 = scmp.eq.s32.totalorder %s22, 1
      %p87 = por %p85, %p86
      %p89 = scmp.ne.s32.totalorder %s74, %s88
      %p90 = scmp.eq.s32.totalorder %s22, 0
      %p91 = por %p89, %p90
      %s92 = ssub.s32 %s16, %s23
      %p93 = scmp.eq.s32.totalorder %s92, 0
      %s95 = sadd.s32 %s94, 1
      %s96 = scalar_select %p93, %s94, %s95
      %p99 = pneg %p93
      %p100 = scmp.eq.s32.totalorder %s16, 1
      %p101 = por %p99, %p100
      %p102 = scmp.ne.s32.totalorder %s94, %s97
      %p103 = scmp.eq.s32.totalorder %s16, 0
      %p104 = por %p102, %p103
      %p105 = scmp.ne.s32.totalorder %s94, %s97
      %p106 = scmp.eq.s32.totalorder %s21, 1
      %p107 = por %p105, %p106
      %p108 = scmp.ne.s32.totalorder %s97, %s98
      %p109 = scmp.eq.s32.totalorder %s21, 0
      %p110 = por %p108, %p109
      %p111 = scmp.ne.s32.totalorder %s97, %s98
      %p112 = scmp.eq.s32.totalorder %s22, 1
      %p113 = por %p111, %p112
      %p115 = scmp.ne.s32.totalorder %s98, %s114
      %p116 = scmp.eq.s32.totalorder %s22, 0
      %p117 = por %p115, %p116
      %p118 = scmp.le.s32.totalorder 1, %s16
      %p119 = scmp.lt.s32.totalorder %s16, 3
      %p120 = pnand %p118, %p119
      %p121 = pneg %p120
      // Predicated region
      $region9: #{tpu_custom_call.1} parent=5 // pred_check
        _
      $region10: #{tpu_custom_call.1} parent=5 // pred_check_branch
        %123 = sbr.rel (%p120) target = $region12
      $region11: #{tpu_custom_call.1} parent=5 // pred_region
        %s124 = ssub.s32 %s16, 1
        // Predicated region
        $region13: #{tpu_custom_call.1} parent=11 // pred_check
          %p125 = pneg %p63
        $region14: #{tpu_custom_call.1} parent=11 // pred_check_branch
          %127 = sbr.rel (%p125) target = $region16
        $region15: #{tpu_custom_call.1} parent=11 // pred_region
          %129 = vsyncadd [#allocation6], 0
          %s130 = sshll.u32 %s1, 4
          %s131 = int_to_ptr.hbm [resolvable:$true] %s130
          %s132 = sshll.u32 [#allocation5], 4
          %s133 = int_to_ptr.vmem [resolvable:$true] %s132
          %138 = dma.hbm_to_vmem [thread:$0]  %s131, 512, %s133, [#allocation6], 64, 64, 4
        $region16: #{tpu_custom_call.1} parent=11 // pred_fallthru
          _
        // Predicated region
        $region17: #{tpu_custom_call.1} parent=11 // pred_check
          %p139 = pneg %p84
        $region18: #{tpu_custom_call.1} parent=11 // pred_check_branch
          %141 = sbr.rel (%p139) target = $region20
        $region19: #{tpu_custom_call.1} parent=11 // pred_region
          _
        $region20: #{tpu_custom_call.1} parent=11 // pred_fallthru
          _
      $region12: #{tpu_custom_call.1} parent=5 // pred_fallthru
        _
      %p142 = scmp.lt.s32.totalorder %s16, 2
      // Predicated region
      $region21: #{tpu_custom_call.1} parent=5 // pred_check
        %p143 = pneg %p142
      $region22: #{tpu_custom_call.1} parent=5 // pred_check_branch
        %145 = sbr.rel (%p143) target = $region24
      $region23: #{tpu_custom_call.1} parent=5 // pred_region
        // Predicated region
        $region25: #{tpu_custom_call.1} parent=23 // pred_check
          %p146 = pneg %p36
        $region26: #{tpu_custom_call.1} parent=23 // pred_check_branch
          %148 = sbr.rel (%p146) target = $region28
        $region27: #{tpu_custom_call.1} parent=23 // pred_region
          %s149 = sand.u32 %s26, 1
          %s150 = scalar_lea.sflag [#allocation3], %s149
          %s151 = sand.u32 %s26, 1
          %s152 = smul.addr %s151, 8
          %s153 = scalar_lea.vmem [#allocation2], %s152
          %s154 = smul.u32 2, %s16
          %156 = vsyncadd %s150, 0
          %s157 = smul.addr %s154, 4
          %s158 = scalar_lea.hbm %s0, %s157
          %s159 = sshll.u32 %s158, 4
          %s160 = int_to_ptr.hbm [resolvable:$true] %s159
          %s161 = sshll.u32 %s153, 4
          %s162 = int_to_ptr.vmem [resolvable:$true] %s161
          %167 = dma.hbm_to_vmem [thread:$0]  %s160, 128, %s162, %s150, 64, 64, 4
        $region28: #{tpu_custom_call.1} parent=23 // pred_fallthru
          _
      $region24: #{tpu_custom_call.1} parent=5 // pred_fallthru
        _
      %p168 = scmp.le.s32.totalorder 1, %s16
      %p169 = scmp.lt.s32.totalorder %s16, 3
      %p170 = pnand %p168, %p169
      %p171 = pneg %p170
      // Predicated region
      $region29: #{tpu_custom_call.1} parent=5 // pred_check
        _
      $region30: #{tpu_custom_call.1} parent=5 // pred_check_branch
        %173 = sbr.rel (%p170) target = $region32
      $region31: #{tpu_custom_call.1} parent=5 // pred_region
        %s174 = ssub.s32 %s16, 1
        %s175 = sand.u32 %s29, 1
        %s176 = scalar_lea.sflag [#allocation3], %s175
        %s177 = sand.u32 %s29, 1
        %s178 = smul.addr %s177, 8
        %s179 = scalar_lea.vmem [#allocation2], %s178
        // Predicated region
        $region33: #{tpu_custom_call.1} parent=31 // pred_check
          %p180 = pneg %p42
        $region34: #{tpu_custom_call.1} parent=31 // pred_check_branch
          %182 = sbr.rel (%p180) target = $region36
        $region35: #{tpu_custom_call.1} parent=31 // pred_region
          %184 = dma.done %s176, 128
        $region36: #{tpu_custom_call.1} parent=31 // pred_fallthru
          _
        // Predicated region
        $region37: #{tpu_custom_call.1} parent=31 // pred_check
          %p185 = pneg %p63
        $region38: #{tpu_custom_call.1} parent=31 // pred_check_branch
          %187 = sbr.rel (%p185) target = $region40
        $region39: #{tpu_custom_call.1} parent=31 // pred_region
          %189 = dma.done [#allocation6], 512
        $region40: #{tpu_custom_call.1} parent=31 // pred_fallthru
          _
        %s190 = sand.u32 %s29, 1
        %s191 = scalar_lea.sflag [#allocation3], %s190
        %s192 = sand.u32 %s29, 1
        %s193 = smul.addr %s192, 8
        %s194 = scalar_lea.vmem [#allocation2], %s193
        %p195 = pneg %p42
        %p196 = pneg %p39
        %p197 = pneg %p63
        %p198 = pneg %p60
        %p199 = pneg %p84
        %p200 = pneg %p81
        %p201 = pneg %p110
        %p202 = pneg %p107
        %s203 = sand.u32 %s97, 1
        %s204 = scalar_lea.sflag [#allocation4], %s203
        %s205 = sand.u32 %s97, 1
        %s206 = smul.addr %s205, 16
        %s207 = scalar_lea.vmem [#allocation7], %s206
        %s208 = smul.u32 2, %s21
        %s209 = smul.u32 2, %s21
        %v211 = vld [vmem:[%s179] sm:$0xf]
        %v212 = vld [vmem:[%s179 + $0x4] sm:$0xf]
        %v213 = vld [vmem:[#allocation5] sm:$0xf]
        %v214 = vld [vmem:[#allocation5 + $0x4] sm:$0xf]
        %v215 = vld [vmem:[#allocation5 + $0x8] sm:$0xf]
        %v216 = vld [vmem:[#allocation5 + $0xc] sm:$0xf]
        %v217 = vld [vmem:[#allocation5 + $0x10] sm:$0xf]
        %v218 = vld [vmem:[#allocation5 + $0x14] sm:$0xf]
        %v219 = vld [vmem:[#allocation5 + $0x18] sm:$0xf]
        %v220 = vld [vmem:[#allocation5 + $0x1c] sm:$0xf]
        %v221 = vld [vmem:[%s2] sm:$0x1]
        %v223 = vperm.slane %v221, 0
        %v227 = vunpack.c.l.b16 %v211
        %v228 = vunpack.c.l.b16 %v212
        %v229 = vpack.c.b16 %v228, %v227
        %v238 = vunpack.c.l.b16 %v213
        %v239 = vunpack.c.l.b16 %v214
        %v240 = vunpack.c.l.b16 %v215
        %v241 = vunpack.c.l.b16 %v216
        %v242 = vunpack.c.l.b16 %v217
        %v243 = vunpack.c.l.b16 %v218
        %v244 = vunpack.c.l.b16 %v219
        %v245 = vunpack.c.l.b16 %v220
        %v246 = vpack.c.b16 %v239, %v238
        %v247 = vpack.c.b16 %v241, %v240
        %v248 = vpack.c.b16 %v243, %v242
        %v249 = vpack.c.b16 %v245, %v244
        %vm254 = vcmask 523264
        %v256 = vsel %vm254, %v229, 0
        %258 = vmatpush.bf16.msra.mxu0 0
        %259 = vmatpush.bf16.msra.mxu0 0
        %260 = vmatpush.bf16.msra.mxu0 0
        %261 = vmatpush.bf16.msra.mxu0 0
        %262 = vmatpush.bf16.msra.mxu0 %v249
        %263 = vmatpush.bf16.msra.mxu0 %v248
        %264 = vmatpush.bf16.msra.mxu0 %v247
        %265 = vmatpush.bf16.msra.mxu0 %v246
        %266 = vmatmul.bf16.gmra.mxu0 %v256
        %v267 = vpop.f32.mrf.mxu0
        %v268 = vadd.f32 %v223, %v267
        %v269 = vpop.f32.mrf.mxu0
        %v270 = vadd.f32 %v223, %v269
        %271 = vdwg.mxu0
        %272 = vst [vmem:[%s207] sm:$0xff] %v268
        %273 = vst [vmem:[%s207 + $0x8] sm:$0xff] %v270
        %s274 = sand.u32 %s97, 1
        %s275 = scalar_lea.sflag [#allocation4], %s274
        %s276 = sand.u32 %s97, 1
        %s277 = smul.addr %s276, 16
        %s278 = scalar_lea.vmem [#allocation7], %s277
        // Predicated region
        $region41: #{tpu_custom_call.1} parent=31 // pred_check
          %p279 = pneg %p107
        $region42: #{tpu_custom_call.1} parent=31 // pred_check_branch
          %281 = sbr.rel (%p279) target = $region44
        $region43: #{tpu_custom_call.1} parent=31 // pred_region
          %s282 = smul.u32 2, %s21
          %284 = vsyncadd %s275, 0
          %s285 = smul.addr %s282, 8
          %s286 = scalar_lea.hbm %s3, %s285
          %s287 = sshll.u32 %s278, 4
          %s288 = int_to_ptr.vmem [resolvable:$true] %s287
          %s289 = sshll.u32 %s286, 4
          %s290 = int_to_ptr.hbm [resolvable:$true] %s289
          %295 = dma.vmem_to_hbm [thread:$0]  %s288, 256, %s290, %s275, 128, 128, 8
        $region44: #{tpu_custom_call.1} parent=31 // pred_fallthru
          _
      $region32: #{tpu_custom_call.1} parent=5 // pred_fallthru
        _
      %p296 = scmp.le.s32.totalorder 2, %s16
      // Predicated region
      $region45: #{tpu_custom_call.1} parent=5 // pred_check
        %p297 = pneg %p296
      $region46: #{tpu_custom_call.1} parent=5 // pred_check_branch
        %299 = sbr.rel (%p297) target = $region48
      $region47: #{tpu_custom_call.1} parent=5 // pred_region
        %s300 = ssub.s32 %s16, 2
        // Predicated region
        $region49: #{tpu_custom_call.1} parent=47 // pred_check
          %p301 = pneg %p113
        $region50: #{tpu_custom_call.1} parent=47 // pred_check_branch
          %303 = sbr.rel (%p301) target = $region52
        $region51: #{tpu_custom_call.1} parent=47 // pred_region
          %s304 = sand.u32 %s98, 1
          %s305 = scalar_lea.sflag [#allocation4], %s304
          %s306 = sand.u32 %s98, 1
          %s307 = smul.addr %s306, 16
          %s308 = scalar_lea.vmem [#allocation7], %s307
          %310 = dma.done %s305, 256
        $region52: #{tpu_custom_call.1} parent=47 // pred_fallthru
          _
      $region48: #{tpu_custom_call.1} parent=5 // pred_fallthru
        _
    $region6: #{tpu_custom_call.1} parent=1 // loop_footer
      %s20 = sadd.s32 1, %s16
    $region7: #{tpu_custom_call.1} parent=1 // loop_footer_branch
      %15 = sbr.rel target = $region3
    $region8: #{tpu_custom_call.1} parent=1 // loop_exit
      _
    %311 = vsyncpa [#allocation3], 1
    %s312 = scalar_lea.sflag [#allocation3], 1
    %313 = vsyncpa %s312, 1
    %314 = vsyncpa [#allocation6], 1
    %315 = vsyncpa [#allocation4], 1
    %s316 = scalar_lea.sflag [#allocation4], 1
    %317 = vsyncpa %s316, 1

</llo_original>
